<compile_context>
chip_gen: v5e
topology: v5e:2x2
jax: 0.10.0
libtpu: 0.0.40
codegen_flags: <defaults>
</compile_context>

<pallas_src>
import functools

import jax
import jax.numpy as jnp
from jax import lax
from jax.experimental import pallas as pl
from jax.experimental.pallas import tpu as pltpu


def _cdiv(a, b):
    return -(-a // b)


def _channel_contract(w_t, v):
    """(midc, K) x (K, c) -> (midc, c).

    For tiny K an MXU matmul wastes the contraction dimension (K=4 of 128/256)
    and is multi-pass in f32; do K unrolled broadcast-multiply-adds on the VPU
    instead.  Fall back to the MXU for larger channel counts.
    """
    K = v.shape[0]
    if K <= 16:
        acc = w_t[:, 0:1] * v[0:1, :]
        for k in range(1, K):
            acc = acc + w_t[:, k:k + 1] * v[k:k + 1, :]
        return acc
    return jnp.dot(w_t, v, preferred_element_type=jnp.float32)


def _attention_gate_kernel(g_ref, x_ref, wg_t_ref, wx_t_ref, wpsi_ref,
                           out_ref, g1_ref, x1_ref, *, chunk):
    ts = g_ref.shape[-1]
    n_chunks = ts // chunk          # ts is chosen so chunk divides it exactly

    # Resident weights are tiny; load once per grid step, hoisted out of the
    # strip-mine loop (JAX does not CSE broadcasts inside the loop).
    wg_t = wg_t_ref[...].astype(jnp.float32)   # (midc, gch)
    wx_t = wx_t_ref[...].astype(jnp.float32)   # (midc, xch)
    wpsi = wpsi_ref[...].astype(jnp.float32)   # (midc, 1)

    def body(c, carry):
        col = pl.multiple_of(c * chunk, chunk)
        sl = pl.ds(col, chunk)

        gv = g_ref[:, sl].astype(jnp.float32)              # (gch,  chunk)
        xv = x_ref[:, sl].astype(jnp.float32)              # (xch,  chunk)

        g1 = _channel_contract(wg_t, gv)                   # (midc, chunk)
        x1 = _channel_contract(wx_t, xv)                   # (midc, chunk)

        a = jnp.maximum(-g1 * x1, 0.0)                     # relu(-g1 * x1)
        # psi (midc -> 1) as a weighted sublane reduction, not an M=1 matmul.
        logits = jnp.sum(a * wpsi, axis=0, keepdims=True)  # (1, chunk)
        attn = jax.nn.sigmoid(logits)

        out_ref[:, sl] = (xv * attn).astype(out_ref.dtype)
        # g1/x1 are part of the module's forward contract (returned).
        g1_ref[:, sl] = g1.astype(g1_ref.dtype)
        x1_ref[:, sl] = x1.astype(x1_ref.dtype)
        return carry

    lax.fori_loop(0, n_chunks, body, None, unroll=True)


@functools.partial(jax.jit, static_argnames=("tm", "g1x1_dtype"))
def attention_gate(g, x, wg, wx, wpsi, *, tm=1024, g1x1_dtype=None):
    """g: (N, gch, H, W), x: (N, xch, H, W)  [NCHW, like PyTorch].

    wg: (gch, midc), wx: (xch, midc), wpsi: (midc, 1)
    returns (out, (g1, x1)); g1/x1 are in the input dtype (or g1x1_dtype).
    """
    N, gch, H, W = g.shape
    _, xch, _, _ = x.shape
    midc = wg.shape[1]
    S = H * W

    g1_dtype = jnp.dtype(g1x1_dtype) if g1x1_dtype is not None else jnp.dtype(g.dtype)
    x1_dtype = jnp.dtype(g1x1_dtype) if g1x1_dtype is not None else jnp.dtype(x.dtype)

    # NCHW kept -- only free reshapes flattening H*W; no transposes, no pads.
    g3 = g.reshape(N, gch, S)
    x3 = x.reshape(N, xch, S)
    wg_t = wg.T                                  # (midc, gch)
    wx_t = wx.T                                  # (midc, xch)

    ge = jnp.dtype(g.dtype).itemsize
    xe = jnp.dtype(x.dtype).itemsize

    # --- Generation-aware VMEM budget (v5e 128 / v6e 128 / v7x 64 MiB per TC).
    try:
        vmem_cap = int(pltpu.get_tpu_info().vmem_capacity_bytes)
    except Exception:
        vmem_cap = 64 * 1024 * 1024              # conservative (v7x per-TC)
    budget = min(vmem_cap // 4, 12 * 1024 * 1024)

    def pipelined_bytes(t):
        # Double-buffered HBM<->VMEM streams (g, x, out, g1, x1) ...
        stream = t * (gch * ge + 2 * xch * xe
                      + midc * (g1_dtype.itemsize + x1_dtype.itemsize))
        # ... plus in-kernel f32 temporaries for one strip-mine chunk.
        temps = min(512, t) * 4 * (4 * midc + 2 * (gch + xch))
        return 2 * stream + temps

    # Spatial tile: as large as possible (amortize ~0.35us/step overhead) while
    # staying well inside the per-generation VMEM budget.  Gains plateau at
    # 512-1024 lanes, so tm defaults to 1024 (v7x-friendly).
    ts = min(tm, S)
    while ts > 128 and pipelined_bytes(ts) > budget:
        ts = max(128, ts // 2)
    if ts < S:
        ts = max(128, (ts // 128) * 128)         # interior tiles lane-aligned

    # v7x megacore: ensure the fully-parallel grid has >=2 steps so both
    # TensorCores get work (only triggers for N==1 with a single spatial tile).
    while N * _cdiv(S, ts) < 2 and ts > 128:
        ts = max(128, ((ts // 2) // 128) * 128)

    # In-kernel strip-mine chunk: keep ~3*(midc, chunk) f32 temps within the
    # 64-vreg file so Mosaic does not spill them through VMEM (vst slot).
    if midc <= 16:
        want = 512
    elif midc <= 64:
        want = 256
    else:
        want = 128
    chunk = ts
    for c in (want, 256, 128):
        if c <= ts and ts % c == 0:
            chunk = c
            break

    grid = (N, _cdiv(S, ts))                     # both axes embarrassingly parallel

    data_spec = lambda c: pl.BlockSpec((None, c, ts), lambda n, s: (n, 0, s))
    w_spec = lambda r, c: pl.BlockSpec((r, c), lambda n, s: (0, 0))
    # NOTE: on v6e, sweeping pipeline_mode=pl.Buffered(3) on the out/g1/x1
    # specs can help if the trace shows exposed writeback; kept at default 2
    # here so the same VMEM budget holds on v7x.

    flops = 2 * N * S * midc * (gch + xch) + N * S * (3 * midc + xch)
    bytes_accessed = N * S * (gch * ge + 2 * xch * xe
                              + midc * (g1_dtype.itemsize + x1_dtype.itemsize))
    vmem_limit = int(min(vmem_cap // 2, 32 * 1024 * 1024))

    out3, g1_3, x1_3 = pl.pallas_call(
        functools.partial(_attention_gate_kernel, chunk=chunk),
        out_shape=(
            jax.ShapeDtypeStruct((N, xch, S), x.dtype),
            jax.ShapeDtypeStruct((N, midc, S), g1_dtype),
            jax.ShapeDtypeStruct((N, midc, S), x1_dtype),
        ),
        grid_spec=pltpu.PrefetchScalarGridSpec(
            num_scalar_prefetch=0,
            grid=grid,
            in_specs=[
                data_spec(gch),            # g tile  (gch, ts)
                data_spec(xch),            # x tile  (xch, ts)
                w_spec(midc, gch),         # Wg^T (resident)
                w_spec(midc, xch),         # Wx^T (resident)
                w_spec(midc, 1),           # Wpsi (resident)
            ],
            out_specs=[data_spec(xch), data_spec(midc), data_spec(midc)],
        ),
        compiler_params=pltpu.CompilerParams(
            dimension_semantics=("parallel", "parallel"),
            vmem_limit_bytes=vmem_limit),
        cost_estimate=pl.CostEstimate(
            flops=int(flops),
            transcendentals=int(N * S),
            bytes_accessed=int(bytes_accessed)),
    )(g3, x3, wg_t, wx_t, wpsi)

    out = out3.reshape(N, xch, H, W)
    g1 = g1_3.reshape(N, midc, H, W)
    x1 = x1_3.reshape(N, midc, H, W)
    return out, (g1, x1)


def _reference(g, x, wg, wx, wpsi):
    # Pure-JAX reference mirroring the PyTorch forward (NCHW 1x1 convs).
    g1 = jnp.einsum("nchw,cm->nmhw", g, wg)
    x1 = jnp.einsum("nchw,cm->nmhw", x, wx)
    attn = jax.nn.relu(-g1 * x1)
    attn = jax.nn.sigmoid(jnp.einsum("nmhw,mo->nohw", attn, wpsi))
    out = x * attn
    return out, (g1, x1)


if __name__ == "__main__":
    key = jax.random.PRNGKey(0)
    N, gch, xch, midc, H, W = 2, 4, 4, 32, 16, 16

    k1, k2, k3, k4, k5 = jax.random.split(key, 5)
    g = jax.random.normal(k1, (N, gch, H, W), dtype=jnp.float32)
    x = jax.random.normal(k2, (N, xch, H, W), dtype=jnp.float32)

    # Conv2d(cin, cout, 1, bias=False) weight is (cout, cin, 1, 1); we store
    # the equivalent (cin, cout) matmul matrices.
    wg = 0.1 * jax.random.normal(k3, (gch, midc), dtype=jnp.float32)
    wx = 0.1 * jax.random.normal(k4, (xch, midc), dtype=jnp.float32)
    wpsi = 0.1 * jax.random.normal(k5, (midc, 1), dtype=jnp.float32)

    out, (g1, x1) = attention_gate(g, x, wg, wx, wpsi)
    jax.block_until_ready(out)

    ref_out, (ref_g1, ref_x1) = _reference(g, x, wg, wx, wpsi)
    assert jnp.allclose(out, ref_out, atol=1e-5, rtol=1e-5)
    assert jnp.allclose(g1, ref_g1, atol=1e-5, rtol=1e-5)
    assert jnp.allclose(x1, ref_x1, atol=1e-5, rtol=1e-5)

    print("KERNEL_OK")
</pallas_src>

<mosaic_0001>
module attributes {stable_mosaic.version = 11 : i64} {
  func.func @_attention_gate_kernel(%arg0: i32, %arg1: i32, %arg2: memref<1x4x256xf32, #tpu.memory_space<vmem>>, %arg3: memref<1x4x256xf32, #tpu.memory_space<vmem>>, %arg4: memref<32x4xf32, #tpu.memory_space<vmem>>, %arg5: memref<32x4xf32, #tpu.memory_space<vmem>>, %arg6: memref<32x1xf32, #tpu.memory_space<vmem>>, %arg7: memref<1x4x256xf32, #tpu.memory_space<vmem>>, %arg8: memref<1x32x256xf32, #tpu.memory_space<vmem>>, %arg9: memref<1x32x256xf32, #tpu.memory_space<vmem>>) attributes {dimension_semantics = [#tpu.dimension_semantics<parallel>, #tpu.dimension_semantics<parallel>], iteration_bounds = array<i64: 2, 1>, scalar_prefetch = 0 : i64, scratch_operands = 0 : i64, tpu.core_type = #tpu.core_type<tc>, window_params = [{transform_indices = @transform_0, window_bounds = array<i64: 1, 4, 256>}, {transform_indices = @transform_1, window_bounds = array<i64: 1, 4, 256>}, {pipeline_mode = #tpu.pipeline_mode<synchronous>, transform_indices = @transform_2, window_bounds = array<i64: 32, 4>}, {pipeline_mode = #tpu.pipeline_mode<synchronous>, transform_indices = @transform_3, window_bounds = array<i64: 32, 4>}, {pipeline_mode = #tpu.pipeline_mode<synchronous>, transform_indices = @transform_4, window_bounds = array<i64: 32, 1>}, {transform_indices = @transform_5, window_bounds = array<i64: 1, 4, 256>}, {transform_indices = @transform_6, window_bounds = array<i64: 1, 32, 256>}, {transform_indices = @transform_7, window_bounds = array<i64: 1, 32, 256>}]} {
    %c0 = arith.constant 0 : index
    %c0_0 = arith.constant 0 : index
    %0 = vector.load %arg4[%c0, %c0_0] : memref<32x4xf32, #tpu.memory_space<vmem>>, vector<32x4xf32>
    %c0_1 = arith.constant 0 : index
    %c0_2 = arith.constant 0 : index
    %1 = vector.load %arg5[%c0_1, %c0_2] : memref<32x4xf32, #tpu.memory_space<vmem>>, vector<32x4xf32>
    %c0_3 = arith.constant 0 : index
    %c0_4 = arith.constant 0 : index
    %2 = vector.load %arg6[%c0_3, %c0_4] : memref<32x1xf32, #tpu.memory_space<vmem>>, vector<32x1xf32>
    %c0_i32 = arith.constant 0 : i32
    %c256_i32 = arith.constant 256 : i32
    %3 = arith.muli %c0_i32, %c256_i32 : i32
    %4 = tpu.assume_multiple %3, 256 : i32
    %c0_5 = arith.constant 0 : index
    %c0_6 = arith.constant 0 : index
    %5 = arith.index_cast %4 : i32 to index
    %6 = vector.load %arg2[%c0_5, %c0_6, %5] : memref<1x4x256xf32, #tpu.memory_space<vmem>>, vector<1x4x256xf32>
    %7 = vector.shape_cast %6 : vector<1x4x256xf32> to vector<4x256xf32>
    %c0_7 = arith.constant 0 : index
    %c0_8 = arith.constant 0 : index
    %8 = arith.index_cast %4 : i32 to index
    %9 = vector.load %arg3[%c0_7, %c0_8, %8] : memref<1x4x256xf32, #tpu.memory_space<vmem>>, vector<1x4x256xf32>
    %10 = vector.shape_cast %9 : vector<1x4x256xf32> to vector<4x256xf32>
    %11 = vector.extract_strided_slice %0 {offsets = [0, 0], sizes = [32, 1], strides = [1, 1]} : vector<32x4xf32> to vector<32x1xf32>
    %12 = vector.extract_strided_slice %7 {offsets = [0, 0], sizes = [1, 256], strides = [1, 1]} : vector<4x256xf32> to vector<1x256xf32>
    %13 = vector.broadcast %11 : vector<32x1xf32> to vector<32x256xf32>
    %14 = vector.broadcast %12 : vector<1x256xf32> to vector<32x256xf32>
    %15 = arith.mulf %13, %14 : vector<32x256xf32>
    %16 = vector.extract_strided_slice %0 {offsets = [0, 1], sizes = [32, 1], strides = [1, 1]} : vector<32x4xf32> to vector<32x1xf32>
    %17 = vector.extract_strided_slice %7 {offsets = [1, 0], sizes = [1, 256], strides = [1, 1]} : vector<4x256xf32> to vector<1x256xf32>
    %18 = vector.broadcast %16 : vector<32x1xf32> to vector<32x256xf32>
    %19 = vector.broadcast %17 : vector<1x256xf32> to vector<32x256xf32>
    %20 = arith.mulf %18, %19 : vector<32x256xf32>
    %21 = arith.addf %15, %20 : vector<32x256xf32>
    %22 = vector.extract_strided_slice %0 {offsets = [0, 2], sizes = [32, 1], strides = [1, 1]} : vector<32x4xf32> to vector<32x1xf32>
    %23 = vector.extract_strided_slice %7 {offsets = [2, 0], sizes = [1, 256], strides = [1, 1]} : vector<4x256xf32> to vector<1x256xf32>
    %24 = vector.broadcast %22 : vector<32x1xf32> to vector<32x256xf32>
    %25 = vector.broadcast %23 : vector<1x256xf32> to vector<32x256xf32>
    %26 = arith.mulf %24, %25 : vector<32x256xf32>
    %27 = arith.addf %21, %26 : vector<32x256xf32>
    %28 = vector.extract_strided_slice %0 {offsets = [0, 3], sizes = [32, 1], strides = [1, 1]} : vector<32x4xf32> to vector<32x1xf32>
    %29 = vector.extract_strided_slice %7 {offsets = [3, 0], sizes = [1, 256], strides = [1, 1]} : vector<4x256xf32> to vector<1x256xf32>
    %30 = vector.broadcast %28 : vector<32x1xf32> to vector<32x256xf32>
    %31 = vector.broadcast %29 : vector<1x256xf32> to vector<32x256xf32>
    %32 = arith.mulf %30, %31 : vector<32x256xf32>
    %33 = arith.addf %27, %32 : vector<32x256xf32>
    %34 = vector.extract_strided_slice %1 {offsets = [0, 0], sizes = [32, 1], strides = [1, 1]} : vector<32x4xf32> to vector<32x1xf32>
    %35 = vector.extract_strided_slice %10 {offsets = [0, 0], sizes = [1, 256], strides = [1, 1]} : vector<4x256xf32> to vector<1x256xf32>
    %36 = vector.broadcast %34 : vector<32x1xf32> to vector<32x256xf32>
    %37 = vector.broadcast %35 : vector<1x256xf32> to vector<32x256xf32>
    %38 = arith.mulf %36, %37 : vector<32x256xf32>
    %39 = vector.extract_strided_slice %1 {offsets = [0, 1], sizes = [32, 1], strides = [1, 1]} : vector<32x4xf32> to vector<32x1xf32>
    %40 = vector.extract_strided_slice %10 {offsets = [1, 0], sizes = [1, 256], strides = [1, 1]} : vector<4x256xf32> to vector<1x256xf32>
    %41 = vector.broadcast %39 : vector<32x1xf32> to vector<32x256xf32>
    %42 = vector.broadcast %40 : vector<1x256xf32> to vector<32x256xf32>
    %43 = arith.mulf %41, %42 : vector<32x256xf32>
    %44 = arith.addf %38, %43 : vector<32x256xf32>
    %45 = vector.extract_strided_slice %1 {offsets = [0, 2], sizes = [32, 1], strides = [1, 1]} : vector<32x4xf32> to vector<32x1xf32>
    %46 = vector.extract_strided_slice %10 {offsets = [2, 0], sizes = [1, 256], strides = [1, 1]} : vector<4x256xf32> to vector<1x256xf32>
    %47 = vector.broadcast %45 : vector<32x1xf32> to vector<32x256xf32>
    %48 = vector.broadcast %46 : vector<1x256xf32> to vector<32x256xf32>
    %49 = arith.mulf %47, %48 : vector<32x256xf32>
    %50 = arith.addf %44, %49 : vector<32x256xf32>
    %51 = vector.extract_strided_slice %1 {offsets = [0, 3], sizes = [32, 1], strides = [1, 1]} : vector<32x4xf32> to vector<32x1xf32>
    %52 = vector.extract_strided_slice %10 {offsets = [3, 0], sizes = [1, 256], strides = [1, 1]} : vector<4x256xf32> to vector<1x256xf32>
    %53 = vector.broadcast %51 : vector<32x1xf32> to vector<32x256xf32>
    %54 = vector.broadcast %52 : vector<1x256xf32> to vector<32x256xf32>
    %55 = arith.mulf %53, %54 : vector<32x256xf32>
    %56 = arith.addf %50, %55 : vector<32x256xf32>
    %cst = arith.constant 0.000000e+00 : f32
    %57 = vector.broadcast %cst : f32 to vector<32x256xf32>
    %58 = arith.subf %57, %33 : vector<32x256xf32>
    %59 = arith.mulf %58, %56 : vector<32x256xf32>
    %cst_9 = arith.constant 0.000000e+00 : f32
    %60 = vector.broadcast %cst_9 : f32 to vector<32x256xf32>
    %61 = arith.maximumf %59, %60 : vector<32x256xf32>
    %62 = vector.broadcast %2 : vector<32x1xf32> to vector<32x256xf32>
    %63 = arith.mulf %61, %62 : vector<32x256xf32>
    %cst_10 = arith.constant dense<0.000000e+00> : vector<256xf32>
    %64 = vector.multi_reduction <add>, %63, %cst_10 [0] : vector<32x256xf32> to vector<256xf32>
    %65 = vector.shape_cast %64 : vector<256xf32> to vector<1x256xf32>
    %66 = arith.negf %65 : vector<1x256xf32>
    %67 = math.exp %66 : vector<1x256xf32>
    %cst_11 = arith.constant 1.000000e+00 : f32
    %68 = vector.broadcast %cst_11 : f32 to vector<1x256xf32>
    %69 = arith.addf %68, %67 : vector<1x256xf32>
    %70 = arith.divf %68, %69 : vector<1x256xf32>
    %71 = vector.broadcast %70 : vector<1x256xf32> to vector<4x256xf32>
    %72 = arith.mulf %10, %71 : vector<4x256xf32>
    %c0_12 = arith.constant 0 : index
    %c0_13 = arith.constant 0 : index
    %73 = arith.index_cast %4 : i32 to index
    %74 = vector.load %arg7[%c0_12, %c0_13, %73] : memref<1x4x256xf32, #tpu.memory_space<vmem>>, vector<1x4x256xf32>
    %75 = vector.shape_cast %74 : vector<1x4x256xf32> to vector<4x256xf32>
    %76 = vector.shape_cast %72 : vector<4x256xf32> to vector<1x4x256xf32>
    tpu.vector_store %arg7[%c0_12, %c0_13, %73], %76 {strides = array<i32>} : memref<1x4x256xf32, #tpu.memory_space<vmem>>, vector<1x4x256xf32>,
    %c0_14 = arith.constant 0 : index
    %c0_15 = arith.constant 0 : index
    %77 = arith.index_cast %4 : i32 to index
    %78 = vector.load %arg8[%c0_14, %c0_15, %77] : memref<1x32x256xf32, #tpu.memory_space<vmem>>, vector<1x32x256xf32>
    %79 = vector.shape_cast %78 : vector<1x32x256xf32> to vector<32x256xf32>
    %80 = vector.shape_cast %33 : vector<32x256xf32> to vector<1x32x256xf32>
    tpu.vector_store %arg8[%c0_14, %c0_15, %77], %80 {strides = array<i32>} : memref<1x32x256xf32, #tpu.memory_space<vmem>>, vector<1x32x256xf32>,
    %c0_16 = arith.constant 0 : index
    %c0_17 = arith.constant 0 : index
    %81 = arith.index_cast %4 : i32 to index
    %82 = vector.load %arg9[%c0_16, %c0_17, %81] : memref<1x32x256xf32, #tpu.memory_space<vmem>>, vector<1x32x256xf32>
    %83 = vector.shape_cast %82 : vector<1x32x256xf32> to vector<32x256xf32>
    %84 = vector.shape_cast %56 : vector<32x256xf32> to vector<1x32x256xf32>
    tpu.vector_store %arg9[%c0_16, %c0_17, %81], %84 {strides = array<i32>} : memref<1x32x256xf32, #tpu.memory_space<vmem>>, vector<1x32x256xf32>,
    %c1_i32 = arith.constant 1 : i32
    return
  }
  func.func @transform_0(%arg0: i32, %arg1: i32) -> (i32, i32, i32) {
    %c0_i32 = arith.constant 0 : i32
    %c0_i32_0 = arith.constant 0 : i32
    return %arg0, %c0_i32, %arg1 : i32, i32, i32
  }
  func.func @transform_1(%arg0: i32, %arg1: i32) -> (i32, i32, i32) {
    %c0_i32 = arith.constant 0 : i32
    %c0_i32_0 = arith.constant 0 : i32
    return %arg0, %c0_i32, %arg1 : i32, i32, i32
  }
  func.func @transform_2(%arg0: i32, %arg1: i32) -> (i32, i32) {
    %c0_i32 = arith.constant 0 : i32
    %c0_i32_0 = arith.constant 0 : i32
    %c0_i32_1 = arith.constant 0 : i32
    return %c0_i32, %c0_i32_0 : i32, i32
  }
  func.func @transform_3(%arg0: i32, %arg1: i32) -> (i32, i32) {
    %c0_i32 = arith.constant 0 : i32
    %c0_i32_0 = arith.constant 0 : i32
    %c0_i32_1 = arith.constant 0 : i32
    return %c0_i32, %c0_i32_0 : i32, i32
  }
  func.func @transform_4(%arg0: i32, %arg1: i32) -> (i32, i32) {
    %c0_i32 = arith.constant 0 : i32
    %c0_i32_0 = arith.constant 0 : i32
    %c0_i32_1 = arith.constant 0 : i32
    return %c0_i32, %c0_i32_0 : i32, i32
  }
  func.func @transform_5(%arg0: i32, %arg1: i32) -> (i32, i32, i32) {
    %c0_i32 = arith.constant 0 : i32
    %c0_i32_0 = arith.constant 0 : i32
    return %arg0, %c0_i32, %arg1 : i32, i32, i32
  }
  func.func @transform_6(%arg0: i32, %arg1: i32) -> (i32, i32, i32) {
    %c0_i32 = arith.constant 0 : i32
    %c0_i32_0 = arith.constant 0 : i32
    return %arg0, %c0_i32, %arg1 : i32, i32, i32
  }
  func.func @transform_7(%arg0: i32, %arg1: i32) -> (i32, i32, i32) {
    %c0_i32 = arith.constant 0 : i32
    %c0_i32_0 = arith.constant 0 : i32
    return %arg0, %c0_i32, %arg1 : i32, i32, i32
  }
}

</mosaic_0001>

<llo_original>
// kernel: attention_gate.1
$region0: #{attention_gate.1}
  #allocation0 [shape = 'u32[]', space=smem, size = 0x4, offset = 0x4, fixed_abs, tag = 'smem constant byte address 0x4 - core index']
  #allocation1 [shape = 'u32[72,128]{1,0:T(1,128)}', space=vmem, size = 0x9000, scoped, tag = 'internal scratch']
  %s0 = inlined_call_operand.vmem [shape: f32[2,4,256], index: 0, kind: input, shape index: {}]
  %s1 = inlined_call_operand.vmem [shape: f32[2,4,256], index: 1, kind: input, shape index: {}]
  %s2 = inlined_call_operand.vmem [shape: f32[32,4], index: 2, kind: input, shape index: {}]
  %s3 = inlined_call_operand.vmem [shape: f32[32,4], index: 3, kind: input, shape index: {}]
  %s4 = inlined_call_operand.vmem [shape: f32[32,1], index: 4, kind: input, shape index: {}]
  %s5 = inlined_call_operand.vmem [shape: f32[2,4,256], index: 5, kind: output, shape index: {0}]
  %s6 = inlined_call_operand.vmem [shape: f32[2,32,256], index: 6, kind: output, shape index: {1}]
  %s7 = inlined_call_operand.vmem [shape: f32[2,32,256], index: 7, kind: output, shape index: {2}]
  %8 = xla_tuple %s5, %s6, %s7
  %s9 = sld [smem:[#allocation0]]
  $region69: #{attention_gate.1} parent=0
    _
  %s11 = ssub.s32 1, %s9
  %s12 = scalar_select 0, %s11, %s9
  loop: start=0, step=1, limit=4
  $region2: #{attention_gate.1} parent=0 // loop_pre_header
    _
  $region3: #{attention_gate.1} parent=0 // loop_header
    %s14 = sphi 0, %s18
    %p15 = scmp.ge.s32.totalorder %s14, 4
    %s21 = sphi 0, %s33
    %s22 = sphi 0, %s29
    %s23 = sphi 0, %s21
    %s24 = sphi 0, %s22
    %s25 = sphi 0, %s23
    %s26 = sphi 0, %s24
    %s38 = sphi 0, %s40
    %s41 = sphi 0, %s38
    %s42 = sphi 0, %s41
    %s58 = sphi 0, %s42
    %s66 = sphi 0, %s68
    %s69 = sphi 0, %s66
    %s70 = sphi 0, %s69
    %s86 = sphi 0, %s70
    %s90 = sphi 0, %s90
    %s92 = sphi 0, %s90
    %s93 = sphi 0, %s92
    %s107 = sphi 0, %s93
    %s111 = sphi 0, %s111
    %s113 = sphi 0, %s111
    %s114 = sphi 0, %s113
    %s128 = sphi 0, %s114
    %s132 = sphi 0, %s132
    %s134 = sphi 0, %s132
    %s135 = sphi 0, %s134
    %s149 = sphi 0, %s135
    %s157 = sphi 0, %s159
    %s160 = sphi 0, %s157
    %s161 = sphi 0, %s160
    %s177 = sphi 0, %s161
    %s185 = sphi 0, %s187
    %s188 = sphi 0, %s185
    %s189 = sphi 0, %s188
    %s205 = sphi 0, %s189
    %s213 = sphi 0, %s215
    %s216 = sphi 0, %s213
    %s217 = sphi 0, %s216
    %s233 = sphi 0, %s217
  $region4: #{attention_gate.1} parent=0 // loop_header_branch
    %17 = sbr.rel (%p15) target = $region8
  $region5: #{attention_gate.1} parent=0 // loop_body
    %s19 = ssub.s32 %s14, 1
    %s20 = ssub.s32 %s14, 2
    %s27 = sadd.s32 1, %s22
    %p28 = scmp.ge.s32.totalorder %s27, 1
    %s29 = scalar_select %p28, 0, %s27
    %s30 = sadd.s32 1, %s21
    %s31 = scalar_select %p28, %s30, %s21
    %p32 = scmp.ge.s32.totalorder %s31, 2
    %s33 = scalar_select %p32, 0, %s31
    %s34 = ssub.s32 %s21, %s33
    %s35 = ssub.s32 %s22, %s29
    %s36 = sor.u32 %s34, %s35
    %p37 = scmp.eq.s32.totalorder %s36, 0
    %s39 = sadd.s32 %s38, 1
    %s40 = scalar_select %p37, %s38, %s39
    %p43 = pneg %p37
    %p44 = scmp.eq.s32.totalorder %s14, 1
    %p45 = por %p43, %p44
    %p46 = scmp.ne.s32.totalorder %s38, %s41
    %p47 = scmp.eq.s32.totalorder %s14, 0
    %p48 = por %p46, %p47
    %p49 = scmp.ne.s32.totalorder %s38, %s41
    %p50 = scmp.eq.s32.totalorder %s19, 1
    %p51 = por %p49, %p50
    %p52 = scmp.ne.s32.totalorder %s41, %s42
    %p53 = scmp.eq.s32.totalorder %s19, 0
    %p54 = por %p52, %p53
    %p55 = scmp.ne.s32.totalorder %s41, %s42
    %p56 = scmp.eq.s32.totalorder %s20, 1
    %p57 = por %p55, %p56
    %p59 = scmp.ne.s32.totalorder %s42, %s58
    %p60 = scmp.eq.s32.totalorder %s20, 0
    %p61 = por %p59, %p60
    %s62 = ssub.s32 %s21, %s33
    %s63 = ssub.s32 %s22, %s29
    %s64 = sor.u32 %s62, %s63
    %p65 = scmp.eq.s32.totalorder %s64, 0
    %s67 = sadd.s32 %s66, 1
    %s68 = scalar_select %p65, %s66, %s67
    %p71 = pneg %p65
    %p72 = scmp.eq.s32.totalorder %s14, 1
    %p73 = por %p71, %p72
    %p74 = scmp.ne.s32.totalorder %s66, %s69
    %p75 = scmp.eq.s32.totalorder %s14, 0
    %p76 = por %p74, %p75
    %p77 = scmp.ne.s32.totalorder %s66, %s69
    %p78 = scmp.eq.s32.totalorder %s19, 1
    %p79 = por %p77, %p78
    %p80 = scmp.ne.s32.totalorder %s69, %s70
    %p81 = scmp.eq.s32.totalorder %s19, 0
    %p82 = por %p80, %p81
    %p83 = scmp.ne.s32.totalorder %s69, %s70
    %p84 = scmp.eq.s32.totalorder %s20, 1
    %p85 = por %p83, %p84
    %p87 = scmp.ne.s32.totalorder %s70, %s86
    %p88 = scmp.eq.s32.totalorder %s20, 0
    %p89 = por %p87, %p88
    %s91 = sadd.s32 %s90, 1
    %p94 = scmp.eq.s32.totalorder %s14, 1
    %p95 = scmp.ne.s32.totalorder %s90, %s92
    %p96 = scmp.eq.s32.totalorder %s14, 0
    %p97 = por %p95, %p96
    %p98 = scmp.ne.s32.totalorder %s90, %s92
    %p99 = scmp.eq.s32.totalorder %s19, 1
    %p100 = por %p98, %p99
    %p101 = scmp.ne.s32.totalorder %s92, %s93
    %p102 = scmp.eq.s32.totalorder %s19, 0
    %p103 = por %p101, %p102
    %p104 = scmp.ne.s32.totalorder %s92, %s93
    %p105 = scmp.eq.s32.totalorder %s20, 1
    %p106 = por %p104, %p105
    %p108 = scmp.ne.s32.totalorder %s93, %s107
    %p109 = scmp.eq.s32.totalorder %s20, 0
    %p110 = por %p108, %p109
    %s112 = sadd.s32 %s111, 1
    %p115 = scmp.eq.s32.totalorder %s14, 1
    %p116 = scmp.ne.s32.totalorder %s111, %s113
    %p117 = scmp.eq.s32.totalorder %s14, 0
    %p118 = por %p116, %p117
    %p119 = scmp.ne.s32.totalorder %s111, %s113
    %p120 = scmp.eq.s32.totalorder %s19, 1
    %p121 = por %p119, %p120
    %p122 = scmp.ne.s32.totalorder %s113, %s114
    %p123 = scmp.eq.s32.totalorder %s19, 0
    %p124 = por %p122, %p123
    %p125 = scmp.ne.s32.totalorder %s113, %s114
    %p126 = scmp.eq.s32.totalorder %s20, 1
    %p127 = por %p125, %p126
    %p129 = scmp.ne.s32.totalorder %s114, %s128
    %p130 = scmp.eq.s32.totalorder %s20, 0
    %p131 = por %p129, %p130
    %s133 = sadd.s32 %s132, 1
    %p136 = scmp.eq.s32.totalorder %s14, 1
    %p137 = scmp.ne.s32.totalorder %s132, %s134
    %p138 = scmp.eq.s32.totalorder %s14, 0
    %p139 = por %p137, %p138
    %p140 = scmp.ne.s32.totalorder %s132, %s134
    %p141 = scmp.eq.s32.totalorder %s19, 1
    %p142 = por %p140, %p141
    %p143 = scmp.ne.s32.totalorder %s134, %s135
    %p144 = scmp.eq.s32.totalorder %s19, 0
    %p145 = por %p143, %p144
    %p146 = scmp.ne.s32.totalorder %s134, %s135
    %p147 = scmp.eq.s32.totalorder %s20, 1
    %p148 = por %p146, %p147
    %p150 = scmp.ne.s32.totalorder %s135, %s149
    %p151 = scmp.eq.s32.totalorder %s20, 0
    %p152 = por %p150, %p151
    %s153 = ssub.s32 %s21, %s33
    %s154 = ssub.s32 %s22, %s29
    %s155 = sor.u32 %s153, %s154
    %p156 = scmp.eq.s32.totalorder %s155, 0
    %s158 = sadd.s32 %s157, 1
    %s159 = scalar_select %p156, %s157, %s158
    %p162 = pneg %p156
    %p163 = scmp.eq.s32.totalorder %s14, 1
    %p164 = por %p162, %p163
    %p165 = scmp.ne.s32.totalorder %s157, %s160
    %p166 = scmp.eq.s32.totalorder %s14, 0
    %p167 = por %p165, %p166
    %p168 = scmp.ne.s32.totalorder %s157, %s160
    %p169 = scmp.eq.s32.totalorder %s19, 1
    %p170 = por %p168, %p169
    %p171 = scmp.ne.s32.totalorder %s160, %s161
    %p172 = scmp.eq.s32.totalorder %s19, 0
    %p173 = por %p171, %p172
    %p174 = scmp.ne.s32.totalorder %s160, %s161
    %p175 = scmp.eq.s32.totalorder %s20, 1
    %p176 = por %p174, %p175
    %p178 = scmp.ne.s32.totalorder %s161, %s177
    %p179 = scmp.eq.s32.totalorder %s20, 0
    %p180 = por %p178, %p179
    %s181 = ssub.s32 %s21, %s33
    %s182 = ssub.s32 %s22, %s29
    %s183 = sor.u32 %s181, %s182
    %p184 = scmp.eq.s32.totalorder %s183, 0
    %s186 = sadd.s32 %s185, 1
    %s187 = scalar_select %p184, %s185, %s186
    %p190 = pneg %p184
    %p191 = scmp.eq.s32.totalorder %s14, 1
    %p192 = por %p190, %p191
    %p193 = scmp.ne.s32.totalorder %s185, %s188
    %p194 = scmp.eq.s32.totalorder %s14, 0
    %p195 = por %p193, %p194
    %p196 = scmp.ne.s32.totalorder %s185, %s188
    %p197 = scmp.eq.s32.totalorder %s19, 1
    %p198 = por %p196, %p197
    %p199 = scmp.ne.s32.totalorder %s188, %s189
    %p200 = scmp.eq.s32.totalorder %s19, 0
    %p201 = por %p199, %p200
    %p202 = scmp.ne.s32.totalorder %s188, %s189
    %p203 = scmp.eq.s32.totalorder %s20, 1
    %p204 = por %p202, %p203
    %p206 = scmp.ne.s32.totalorder %s189, %s205
    %p207 = scmp.eq.s32.totalorder %s20, 0
    %p208 = por %p206, %p207
    %s209 = ssub.s32 %s21, %s33
    %s210 = ssub.s32 %s22, %s29
    %s211 = sor.u32 %s209, %s210
    %p212 = scmp.eq.s32.totalorder %s211, 0
    %s214 = sadd.s32 %s213, 1
    %s215 = scalar_select %p212, %s213, %s214
    %p218 = pneg %p212
    %p219 = scmp.eq.s32.totalorder %s14, 1
    %p220 = por %p218, %p219
    %p221 = scmp.ne.s32.totalorder %s213, %s216
    %p222 = scmp.eq.s32.totalorder %s14, 0
    %p223 = por %p221, %p222
    %p224 = scmp.ne.s32.totalorder %s213, %s216
    %p225 = scmp.eq.s32.totalorder %s19, 1
    %p226 = por %p224, %p225
    %p227 = scmp.ne.s32.totalorder %s216, %s217
    %p228 = scmp.eq.s32.totalorder %s19, 0
    %p229 = por %p227, %p228
    %p230 = scmp.ne.s32.totalorder %s216, %s217
    %p231 = scmp.eq.s32.totalorder %s20, 1
    %p232 = por %p230, %p231
    %p234 = scmp.ne.s32.totalorder %s217, %s233
    %p235 = scmp.eq.s32.totalorder %s20, 0
    %p236 = por %p234, %p235
    %p237 = scmp.le.s32.totalorder 1, %s14
    %p238 = scmp.lt.s32.totalorder %s14, 3
    %p239 = pnand %p237, %p238
    %p240 = pneg %p239
    // Predicated region
    $region9: #{attention_gate.1} parent=5 // pred_check
      _
    $region10: #{attention_gate.1} parent=5 // pred_check_branch
      %242 = sbr.rel (%p239) target = $region12
    $region11: #{attention_gate.1} parent=5 // pred_region
      %s243 = ssub.s32 %s14, 1
      // Predicated region
      $region13: #{attention_gate.1} parent=11 // pred_check
        %p244 = pneg %p103
      $region14: #{attention_gate.1} parent=11 // pred_check_branch
        %246 = sbr.rel (%p244) target = $region16
      $region15: #{attention_gate.1} parent=11 // pred_region
        _
      $region16: #{attention_gate.1} parent=11 // pred_fallthru
        _
      // Predicated region
      $region17: #{attention_gate.1} parent=11 // pred_check
        %p247 = pneg %p124
      $region18: #{attention_gate.1} parent=11 // pred_check_branch
        %249 = sbr.rel (%p247) target = $region20
      $region19: #{attention_gate.1} parent=11 // pred_region
        _
      $region20: #{attention_gate.1} parent=11 // pred_fallthru
        _
      // Predicated region
      $region21: #{attention_gate.1} parent=11 // pred_check
        %p250 = pneg %p145
      $region22: #{attention_gate.1} parent=11 // pred_check_branch
        %252 = sbr.rel (%p250) target = $region24
      $region23: #{attention_gate.1} parent=11 // pred_region
        _
      $region24: #{attention_gate.1} parent=11 // pred_fallthru
        _
    $region12: #{attention_gate.1} parent=5 // pred_fallthru
      _
    %p253 = scmp.lt.s32.totalorder %s14, 2
    // Predicated region
    $region25: #{attention_gate.1} parent=5 // pred_check
      %p254 = pneg %p253
    $region26: #{attention_gate.1} parent=5 // pred_check_branch
      %256 = sbr.rel (%p254) target = $region28
    $region27: #{attention_gate.1} parent=5 // pred_region
      // Predicated region
      $region29: #{attention_gate.1} parent=27 // pred_check
        %p257 = pneg %p48
      $region30: #{attention_gate.1} parent=27 // pred_check_branch
        %259 = sbr.rel (%p257) target = $region32
      $region31: #{attention_gate.1} parent=27 // pred_region
        %s260 = smul.u32 2, %s22
        %p261 = scmp.lt.s32.totalorder %s21, 1
        %s262 = scalar_select %p261, %s21, 1
        %p263 = scmp.lt.s32.totalorder %s260, 1
        %s264 = scalar_select %p263, %s260, 1
        %s265 = smul.addr %s262, 2
        %s266 = sadd.s32 %s264, %s265
        %s267 = smul.addr %s266, 4
        %s268 = scalar_lea.vmem %s0, %s267
        %s269 = smul.u32 2, %s22
      $region32: #{attention_gate.1} parent=27 // pred_fallthru
        _
      // Predicated region
      $region33: #{attention_gate.1} parent=27 // pred_check
        %p270 = pneg %p76
      $region34: #{attention_gate.1} parent=27 // pred_check_branch
        %272 = sbr.rel (%p270) target = $region36
      $region35: #{attention_gate.1} parent=27 // pred_region
        %s273 = smul.u32 2, %s22
        %p274 = scmp.lt.s32.totalorder %s21, 1
        %s275 = scalar_select %p274, %s21, 1
        %p276 = scmp.lt.s32.totalorder %s273, 1
        %s277 = scalar_select %p276, %s273, 1
        %s278 = smul.addr %s275, 2
        %s279 = sadd.s32 %s277, %s278
        %s280 = smul.addr %s279, 4
        %s281 = scalar_lea.vmem %s1, %s280
        %s282 = smul.u32 2, %s22
      $region36: #{attention_gate.1} parent=27 // pred_fallthru
        _
    $region28: #{attention_gate.1} parent=5 // pred_fallthru
      _
    %p283 = scmp.le.s32.totalorder 1, %s14
    %p284 = scmp.lt.s32.totalorder %s14, 3
    %p285 = pnand %p283, %p284
    %p286 = pneg %p285
    // Predicated region
    $region37: #{attention_gate.1} parent=5 // pred_check
      _
    $region38: #{attention_gate.1} parent=5 // pred_check_branch
      %288 = sbr.rel (%p285) target = $region40
    $region39: #{attention_gate.1} parent=5 // pred_region
      %s289 = ssub.s32 %s14, 1
      %s290 = smul.u32 2, %s24
      %p291 = scmp.lt.s32.totalorder %s23, 1
      %s292 = scalar_select %p291, %s23, 1
      %p293 = scmp.lt.s32.totalorder %s290, 1
      %s294 = scalar_select %p293, %s290, 1
      %s295 = smul.addr %s292, 2
      %s296 = sadd.s32 %s294, %s295
      %s297 = smul.addr %s296, 4
      %s298 = scalar_lea.vmem %s0, %s297
      %p299 = pneg %p54
      %p300 = pneg %p51
      %s301 = smul.u32 2, %s24
      %p302 = scmp.lt.s32.totalorder %s23, 1
      %s303 = scalar_select %p302, %s23, 1
      %p304 = scmp.lt.s32.totalorder %s301, 1
      %s305 = scalar_select %p304, %s301, 1
      %s306 = smul.addr %s303, 2
      %s307 = sadd.s32 %s305, %s306
      %s308 = smul.addr %s307, 4
      %s309 = scalar_lea.vmem %s1, %s308
      %p310 = pneg %p82
      %p311 = pneg %p79
      %p312 = pneg %p103
      %p313 = pneg %p100
      %p314 = pneg %p124
      %p315 = pneg %p121
      %p316 = pneg %p145
      %p317 = pneg %p142
      %p318 = pneg %p173
      %p319 = pneg %p170
      %s320 = smul.u32 2, %s24
      %p321 = scmp.lt.s32.totalorder %s23, 1
      %s322 = scalar_select %p321, %s23, 1
      %p323 = scmp.lt.s32.totalorder %s320, 1
      %s324 = scalar_select %p323, %s320, 1
      %s325 = smul.addr %s322, 2
      %s326 = sadd.s32 %s324, %s325
      %s327 = smul.addr %s326, 4
      %s328 = scalar_lea.vmem %s5, %s327
      %p329 = pneg %p201
      %p330 = pneg %p198
      %s331 = smul.u32 2, %s24
      %p332 = scmp.lt.s32.totalorder %s23, 1
      %s333 = scalar_select %p332, %s23, 1
      %p334 = scmp.lt.s32.totalorder %s331, 1
      %s335 = scalar_select %p334, %s331, 1
      %s336 = smul.addr %s333, 8
      %s337 = sadd.s32 %s335, %s336
      %s338 = smul.addr %s337, 8
      %s339 = scalar_lea.vmem %s6, %s338
      %p340 = pneg %p229
      %p341 = pneg %p226
      %s342 = smul.u32 2, %s24
      %p343 = scmp.lt.s32.totalorder %s23, 1
      %s344 = scalar_select %p343, %s23, 1
      %p345 = scmp.lt.s32.totalorder %s342, 1
      %s346 = scalar_select %p345, %s342, 1
      %s347 = smul.addr %s344, 8
      %s348 = sadd.s32 %s346, %s347
      %s349 = smul.addr %s348, 8
      %s350 = scalar_lea.vmem %s7, %s349
      %s351 = smul.u32 2, %s24
      %p352 = scmp.lt.s32.totalorder %s23, 1
      %s353 = scalar_select %p352, %s23, 1
      %p354 = scmp.lt.s32.totalorder %s351, 1
      %s355 = scalar_select %p354, %s351, 1
      %s356 = smul.addr %s353, 2
      %s357 = sadd.s32 %s355, %s356
      %s358 = smul.addr %s357, 4
      %s359 = scalar_lea.vmem %s0, %s358
      %s360 = smul.u32 2, %s24
      %s361 = smul.u32 2, %s24
      %p362 = scmp.lt.s32.totalorder %s23, 1
      %s363 = scalar_select %p362, %s23, 1
      %p364 = scmp.lt.s32.totalorder %s361, 1
      %s365 = scalar_select %p364, %s361, 1
      %s366 = smul.addr %s363, 2
      %s367 = sadd.s32 %s365, %s366
      %s368 = smul.addr %s367, 4
      %s369 = scalar_lea.vmem %s1, %s368
      %s370 = smul.u32 2, %s24
      %s371 = smul.u32 2, %s24
      %p372 = scmp.lt.s32.totalorder %s23, 1
      %s373 = scalar_select %p372, %s23, 1
      %p374 = scmp.lt.s32.totalorder %s371, 1
      %s375 = scalar_select %p374, %s371, 1
      %s376 = smul.addr %s373, 2
      %s377 = sadd.s32 %s375, %s376
      %s378 = smul.addr %s377, 4
      %s379 = scalar_lea.vmem %s5, %s378
      %s380 = smul.u32 2, %s24
      %s381 = smul.u32 2, %s24
      %p382 = scmp.lt.s32.totalorder %s23, 1
      %s383 = scalar_select %p382, %s23, 1
      %p384 = scmp.lt.s32.totalorder %s381, 1
      %s385 = scalar_select %p384, %s381, 1
      %s386 = smul.addr %s383, 8
      %s387 = sadd.s32 %s385, %s386
      %s388 = smul.addr %s387, 8
      %s389 = scalar_lea.vmem %s6, %s388
      %s390 = smul.u32 2, %s24
      %s391 = smul.u32 2, %s24
      %p392 = scmp.lt.s32.totalorder %s23, 1
      %s393 = scalar_select %p392, %s23, 1
      %p394 = scmp.lt.s32.totalorder %s391, 1
      %s395 = scalar_select %p394, %s391, 1
      %s396 = smul.addr %s393, 8
      %s397 = sadd.s32 %s395, %s396
      %s398 = smul.addr %s397, 8
      %s399 = scalar_lea.vmem %s7, %s398
      %s400 = smul.u32 2, %s24
      %v401 = vld [vmem:[%s2] sm:$0xff]
      %v402 = vld [vmem:[%s2 + $0x8] sm:$0xff]
      %v403 = vld [vmem:[%s2 + $0x10] sm:$0xff]
      %v404 = vld [vmem:[%s2 + $0x18] sm:$0xff]
      %v405 = vld [vmem:[%s3] sm:$0xff]
      %v406 = vld [vmem:[%s3 + $0x8] sm:$0xff]
      %v407 = vld [vmem:[%s3 + $0x10] sm:$0xff]
      %v408 = vld [vmem:[%s3 + $0x18] sm:$0xff]
      %v409 = vld [vmem:[%s4] sm:$0xff]
      %v410 = vld [vmem:[%s4 + $0x8] sm:$0xff]
      %v411 = vld [vmem:[%s4 + $0x10] sm:$0xff]
      %v412 = vld [vmem:[%s4 + $0x18] sm:$0xff]
      %v413 = vld [vmem:[%s359] sm:$0xff]
      %v414 = vld [vmem:[%s369] sm:$0xff]
      %416 = vset.pattern.permute.xlu0 0
      %417 = vperm.xlu0 %416, %v401
      %v418 = vpop.permute.xlu0 %417
      %421 = vset.pattern.permute.xlu0 0
      %422 = vperm.xlu0 %421, %v402
      %v423 = vpop.permute.xlu0 %422
      %426 = vset.pattern.permute.xlu0 0
      %427 = vperm.xlu0 %426, %v403
      %v428 = vpop.permute.xlu0 %427
      %431 = vset.pattern.permute.xlu0 0
      %432 = vperm.xlu0 %431, %v404
      %v433 = vpop.permute.xlu0 %432
      %v436 = vperm.slane %v413, 0
      %v437 = vperm.slane %v413, 4
      %v440 = vperm.slane %v436, 0
      %v441 = vperm.slane %v437, 0
      %v442 = vmul.f32 %v418, %v440
      %v443 = vmul.f32 %v418, %v441
      %v444 = vmul.f32 %v423, %v440
      %v445 = vmul.f32 %v423, %v441
      %v446 = vmul.f32 %v428, %v440
      %v447 = vmul.f32 %v428, %v441
      %v448 = vmul.f32 %v433, %v440
      %v449 = vmul.f32 %v433, %v441
      %450 = vset.pattern.permute.xlu0 1
      %451 = vperm.xlu0 %450, %v401
      %v452 = vpop.permute.xlu0 %451
      %454 = vset.pattern.permute.xlu0 1
      %455 = vperm.xlu0 %454, %v402
      %v456 = vpop.permute.xlu0 %455
      %458 = vset.pattern.permute.xlu0 1
      %459 = vperm.xlu0 %458, %v403
      %v460 = vpop.permute.xlu0 %459
      %462 = vset.pattern.permute.xlu0 1
      %463 = vperm.xlu0 %462, %v404
      %v464 = vpop.permute.xlu0 %463
      %v466 = vperm.slane %v413, 1
      %v467 = vperm.slane %v413, 5
      %v470 = vperm.slane %v466, 1
      %v471 = vperm.slane %v467, 1
      %v472 = vmul.f32 %v452, %v470
      %v473 = vmul.f32 %v452, %v471
      %v474 = vmul.f32 %v456, %v470
      %v475 = vmul.f32 %v456, %v471
      %v476 = vmul.f32 %v460, %v470
      %v477 = vmul.f32 %v460, %v471
      %v478 = vmul.f32 %v464, %v470
      %v479 = vmul.f32 %v464, %v471
      %v480 = vadd.f32 %v442, %v472
      %v481 = vadd.f32 %v443, %v473
      %v482 = vadd.f32 %v444, %v474
      %v483 = vadd.f32 %v445, %v475
      %v484 = vadd.f32 %v446, %v476
      %v485 = vadd.f32 %v447, %v477
      %v486 = vadd.f32 %v448, %v478
      %v487 = vadd.f32 %v449, %v479
      %488 = vset.pattern.permute.xlu0 2
      %489 = vperm.xlu0 %488, %v401
      %v490 = vpop.permute.xlu0 %489
      %492 = vset.pattern.permute.xlu0 2
      %493 = vperm.xlu0 %492, %v402
      %v494 = vpop.permute.xlu0 %493
      %496 = vset.pattern.permute.xlu0 2
      %497 = vperm.xlu0 %496, %v403
      %v498 = vpop.permute.xlu0 %497
      %500 = vset.pattern.permute.xlu0 2
      %501 = vperm.xlu0 %500, %v404
      %v502 = vpop.permute.xlu0 %501
      %v504 = vperm.slane %v413, 2
      %v505 = vperm.slane %v413, 6
      %v508 = vperm.slane %v504, 2
      %v509 = vperm.slane %v505, 2
      %v510 = vmul.f32 %v490, %v508
      %v511 = vmul.f32 %v490, %v509
      %v512 = vmul.f32 %v494, %v508
      %v513 = vmul.f32 %v494, %v509
      %v514 = vmul.f32 %v498, %v508
      %v515 = vmul.f32 %v498, %v509
      %v516 = vmul.f32 %v502, %v508
      %v517 = vmul.f32 %v502, %v509
      %v518 = vadd.f32 %v480, %v510
      %v519 = vadd.f32 %v481, %v511
      %v520 = vadd.f32 %v482, %v512
      %v521 = vadd.f32 %v483, %v513
      %v522 = vadd.f32 %v484, %v514
      %v523 = vadd.f32 %v485, %v515
      %v524 = vadd.f32 %v486, %v516
      %v525 = vadd.f32 %v487, %v517
      %526 = vset.pattern.permute.xlu0 3
      %527 = vperm.xlu0 %526, %v401
      %v528 = vpop.permute.xlu0 %527
      %530 = vset.pattern.permute.xlu0 3
      %531 = vperm.xlu0 %530, %v402
      %v532 = vpop.permute.xlu0 %531
      %534 = vset.pattern.permute.xlu0 3
      %535 = vperm.xlu0 %534, %v403
      %v536 = vpop.permute.xlu0 %535
      %538 = vset.pattern.permute.xlu0 3
      %539 = vperm.xlu0 %538, %v404
      %v540 = vpop.permute.xlu0 %539
      %v542 = vperm.slane %v413, 3
      %v543 = vperm.slane %v413, 7
      %v546 = vperm.slane %v542, 3
      %v547 = vperm.slane %v543, 3
      %v548 = vmul.f32 %v528, %v546
      %v549 = vmul.f32 %v528, %v547
      %v550 = vmul.f32 %v532, %v546
      %v551 = vmul.f32 %v532, %v547
      %v552 = vmul.f32 %v536, %v546
      %v553 = vmul.f32 %v536, %v547
      %v554 = vmul.f32 %v540, %v546
      %v555 = vmul.f32 %v540, %v547
      %v556 = vadd.f32 %v518, %v548
      %v557 = vadd.f32 %v519, %v549
      %v558 = vadd.f32 %v520, %v550
      %v559 = vadd.f32 %v521, %v551
      %v560 = vadd.f32 %v522, %v552
      %v561 = vadd.f32 %v523, %v553
      %v562 = vadd.f32 %v524, %v554
      %v563 = vadd.f32 %v525, %v555
      %565 = vset.pattern.permute.xlu0 0
      %566 = vperm.xlu0 %565, %v405
      %v567 = vpop.permute.xlu0 %566
      %570 = vset.pattern.permute.xlu0 0
      %571 = vperm.xlu0 %570, %v406
      %v572 = vpop.permute.xlu0 %571
      %575 = vset.pattern.permute.xlu0 0
      %576 = vperm.xlu0 %575, %v407
      %v577 = vpop.permute.xlu0 %576
      %580 = vset.pattern.permute.xlu0 0
      %581 = vperm.xlu0 %580, %v408
      %v582 = vpop.permute.xlu0 %581
      %v585 = vperm.slane %v414, 0
      %v586 = vperm.slane %v414, 4
      %v589 = vperm.slane %v585, 0
      %v590 = vperm.slane %v586, 0
      %v591 = vmul.f32 %v567, %v589
      %v592 = vmul.f32 %v567, %v590
      %v593 = vmul.f32 %v572, %v589
      %v594 = vmul.f32 %v572, %v590
      %v595 = vmul.f32 %v577, %v589
      %v596 = vmul.f32 %v577, %v590
      %v597 = vmul.f32 %v582, %v589
      %v598 = vmul.f32 %v582, %v590
      %599 = vset.pattern.permute.xlu0 1
      %600 = vperm.xlu0 %599, %v405
      %v601 = vpop.permute.xlu0 %600
      %603 = vset.pattern.permute.xlu0 1
      %604 = vperm.xlu0 %603, %v406
      %v605 = vpop.permute.xlu0 %604
      %607 = vset.pattern.permute.xlu0 1
      %608 = vperm.xlu0 %607, %v407
      %v609 = vpop.permute.xlu0 %608
      %611 = vset.pattern.permute.xlu0 1
      %612 = vperm.xlu0 %611, %v408
      %v613 = vpop.permute.xlu0 %612
      %v615 = vperm.slane %v414, 1
      %v616 = vperm.slane %v414, 5
      %v619 = vperm.slane %v615, 1
      %v620 = vperm.slane %v616, 1
      %v621 = vmul.f32 %v601, %v619
      %v622 = vmul.f32 %v601, %v620
      %v623 = vmul.f32 %v605, %v619
      %v624 = vmul.f32 %v605, %v620
      %v625 = vmul.f32 %v609, %v619
      %v626 = vmul.f32 %v609, %v620
      %v627 = vmul.f32 %v613, %v619
      %v628 = vmul.f32 %v613, %v620
      %v629 = vadd.f32 %v591, %v621
      %v630 = vadd.f32 %v592, %v622
      %v631 = vadd.f32 %v593, %v623
      %v632 = vadd.f32 %v594, %v624
      %v633 = vadd.f32 %v595, %v625
      %v634 = vadd.f32 %v596, %v626
      %v635 = vadd.f32 %v597, %v627
      %v636 = vadd.f32 %v598, %v628
      %637 = vset.pattern.permute.xlu0 2
      %638 = vperm.xlu0 %637, %v405
      %v639 = vpop.permute.xlu0 %638
      %641 = vset.pattern.permute.xlu0 2
      %642 = vperm.xlu0 %641, %v406
      %v643 = vpop.permute.xlu0 %642
      %645 = vset.pattern.permute.xlu0 2
      %646 = vperm.xlu0 %645, %v407
      %v647 = vpop.permute.xlu0 %646
      %649 = vset.pattern.permute.xlu0 2
      %650 = vperm.xlu0 %649, %v408
      %v651 = vpop.permute.xlu0 %650
      %v653 = vperm.slane %v414, 2
      %v654 = vperm.slane %v414, 6
      %v657 = vperm.slane %v653, 2
      %v658 = vperm.slane %v654, 2
      %v659 = vmul.f32 %v639, %v657
      %v660 = vmul.f32 %v639, %v658
      %v661 = vmul.f32 %v643, %v657
      %v662 = vmul.f32 %v643, %v658
      %v663 = vmul.f32 %v647, %v657
      %v664 = vmul.f32 %v647, %v658
      %v665 = vmul.f32 %v651, %v657
      %v666 = vmul.f32 %v651, %v658
      %v667 = vadd.f32 %v629, %v659
      %v668 = vadd.f32 %v630, %v660
      %v669 = vadd.f32 %v631, %v661
      %v670 = vadd.f32 %v632, %v662
      %v671 = vadd.f32 %v633, %v663
      %v672 = vadd.f32 %v634, %v664
      %v673 = vadd.f32 %v635, %v665
      %v674 = vadd.f32 %v636, %v666
      %675 = vset.pattern.permute.xlu0 3
      %676 = vperm.xlu0 %675, %v405
      %v677 = vpop.permute.xlu0 %676
      %679 = vset.pattern.permute.xlu0 3
      %680 = vperm.xlu0 %679, %v406
      %v681 = vpop.permute.xlu0 %680
      %683 = vset.pattern.permute.xlu0 3
      %684 = vperm.xlu0 %683, %v407
      %v685 = vpop.permute.xlu0 %684
      %687 = vset.pattern.permute.xlu0 3
      %688 = vperm.xlu0 %687, %v408
      %v689 = vpop.permute.xlu0 %688
      %v691 = vperm.slane %v414, 3
      %v692 = vperm.slane %v414, 7
      %v695 = vperm.slane %v691, 3
      %v696 = vperm.slane %v692, 3
      %v697 = vmul.f32 %v677, %v695
      %v698 = vmul.f32 %v677, %v696
      %v699 = vmul.f32 %v681, %v695
      %v700 = vmul.f32 %v681, %v696
      %v701 = vmul.f32 %v685, %v695
      %v702 = vmul.f32 %v685, %v696
      %v703 = vmul.f32 %v689, %v695
      %v704 = vmul.f32 %v689, %v696
      %v705 = vadd.f32 %v667, %v697
      %v706 = vadd.f32 %v668, %v698
      %v707 = vadd.f32 %v669, %v699
      %v708 = vadd.f32 %v670, %v700
      %v709 = vadd.f32 %v671, %v701
      %v710 = vadd.f32 %v672, %v702
      %v711 = vadd.f32 %v673, %v703
      %v712 = vadd.f32 %v674, %v704
      %v713 = vsub.f32 0.0, %v556
      %v714 = vsub.f32 0.0, %v557
      %v715 = vsub.f32 0.0, %v558
      %v716 = vsub.f32 0.0, %v559
      %v717 = vsub.f32 0.0, %v560
      %v718 = vsub.f32 0.0, %v561
      %v719 = vsub.f32 0.0, %v562
      %v720 = vsub.f32 0.0, %v563
      %v721 = vmul.f32 %v713, %v705
      %v722 = vmul.f32 %v714, %v706
      %v723 = vmul.f32 %v715, %v707
      %v724 = vmul.f32 %v716, %v708
      %v725 = vmul.f32 %v717, %v709
      %v726 = vmul.f32 %v718, %v710
      %v727 = vmul.f32 %v719, %v711
      %v728 = vmul.f32 %v720, %v712
      %v729 = vmax.f32 %v721, 0.0
      %v730 = vmax.f32 %v722, 0.0
      %v731 = vmax.f32 %v723, 0.0
      %v732 = vmax.f32 %v724, 0.0
      %v733 = vmax.f32 %v725, 0.0
      %v734 = vmax.f32 %v726, 0.0
      %v735 = vmax.f32 %v727, 0.0
      %v736 = vmax.f32 %v728, 0.0
      %738 = vset.pattern.permute.xlu0 0
      %739 = vperm.xlu0 %738, %v409
      %v740 = vpop.permute.xlu0 %739
      %743 = vset.pattern.permute.xlu0 0
      %744 = vperm.xlu0 %743, %v410
      %v745 = vpop.permute.xlu0 %744
      %748 = vset.pattern.permute.xlu0 0
      %749 = vperm.xlu0 %748, %v411
      %v750 = vpop.permute.xlu0 %749
      %753 = vset.pattern.permute.xlu0 0
      %754 = vperm.xlu0 %753, %v412
      %v755 = vpop.permute.xlu0 %754
      %v757 = vmul.f32 %v729, %v740
      %v758 = vmul.f32 %v730, %v740
      %v759 = vmul.f32 %v731, %v745
      %v760 = vmul.f32 %v732, %v745
      %v761 = vmul.f32 %v733, %v750
      %v762 = vmul.f32 %v734, %v750
      %v763 = vmul.f32 %v735, %v755
      %v764 = vmul.f32 %v736, %v755
      %v765 = vadd.f32 %v757, %v759
      %v766 = vadd.f32 %v765, %v761
      %v767 = vadd.f32 %v766, %v763
      %v768 = vrot.slane %v767, 4
      %v769 = vadd.f32 %v767, %v768
      %v770 = vrot.slane %v769, 2
      %v771 = vadd.f32 %v769, %v770
      %v772 = vrot.slane %v771, 1
      %v773 = vadd.f32 %v771, %v772
      %v774 = vadd.f32 %v758, %v760
      %v775 = vadd.f32 %v774, %v762
      %v776 = vadd.f32 %v775, %v764
      %v777 = vrot.slane %v776, 4
      %v778 = vadd.f32 %v776, %v777
      %v779 = vrot.slane %v778, 2
      %v780 = vadd.f32 %v778, %v779
      %v781 = vrot.slane %v780, 1
      %v782 = vadd.f32 %v780, %v781
      %v783 = vxor.u32 %v773, 2147483648
      %v784 = vxor.u32 %v782, 2147483648
      %v785 = vmul.f32 %v783, 1.442695
      %v786 = vpow.pop %v785
      %v787 = vmul.f32 %v784, 1.442695
      %v788 = vpow.pop %v787
      %v789 = vadd.f32 %v786, 1.0
      %v790 = vadd.f32 %v788, 1.0
      %v791 = vrcp.pop %v789
      %v792 = vmul.f32 %v789, %v791
      %v793 = vsub.f32 1.0, %v792
      %v794 = vmul.f32 %v791, %v793
      %v795 = vadd.f32 %v791, %v794
      %vm796 = vweird.f32 %v789
      %vm797 = vweird.f32 %v791
      %vm798 = vmor %vm796, %vm797
      %v799 = vsel %vm798, %v791, %v795
      %v800 = vand.u32 2147483647, %v789
      %vm801 = vcmp.eq.f32.partialorder %v800, 8.507059e+37
      %v802 = vand.u32 %v789, 2147483648
      %v803 = vor.u32 1.1754944e-38, %v802
      %v804 = vsel %vm801, %v803, %v799
      %v805 = vmul.f32 1.0, %v804
      %v806 = vrcp.pop %v790
      %v807 = vmul.f32 %v790, %v806
      %v808 = vsub.f32 1.0, %v807
      %v809 = vmul.f32 %v806, %v808
      %v810 = vadd.f32 %v806, %v809
      %vm811 = vweird.f32 %v790
      %vm812 = vweird.f32 %v806
      %vm813 = vmor %vm811, %vm812
      %v814 = vsel %vm813, %v806, %v810
      %v815 = vand.u32 2147483647, %v790
      %vm816 = vcmp.eq.f32.partialorder %v815, 8.507059e+37
      %v817 = vand.u32 %v790, 2147483648
      %v818 = vor.u32 1.1754944e-38, %v817
      %v819 = vsel %vm816, %v818, %v814
      %v820 = vmul.f32 1.0, %v819
      %v823 = vrot.slane %v820, 4
      %vm824 = vcmask 1043456
      %v825 = vsel %vm824, %v805, %v823
      %v827 = vmul.f32 %v414, %v825
      %828 = vst [vmem:[%s379] sm:$0xff] %v827
      %829 = vst [vmem:[%s389] sm:$0xff] %v556
      %830 = vst [vmem:[%s389 + $0x8] sm:$0xff] %v557
      %831 = vst [vmem:[%s389 + $0x10] sm:$0xff] %v558
      %832 = vst [vmem:[%s389 + $0x18] sm:$0xff] %v559
      %833 = vst [vmem:[%s389 + $0x20] sm:$0xff] %v560
      %834 = vst [vmem:[%s389 + $0x28] sm:$0xff] %v561
      %835 = vst [vmem:[%s389 + $0x30] sm:$0xff] %v562
      %836 = vst [vmem:[%s389 + $0x38] sm:$0xff] %v563
      %837 = vst [vmem:[%s399] sm:$0xff] %v705
      %838 = vst [vmem:[%s399 + $0x8] sm:$0xff] %v706
      %839 = vst [vmem:[%s399 + $0x10] sm:$0xff] %v707
      %840 = vst [vmem:[%s399 + $0x18] sm:$0xff] %v708
      %841 = vst [vmem:[%s399 + $0x20] sm:$0xff] %v709
      %842 = vst [vmem:[%s399 + $0x28] sm:$0xff] %v710
      %843 = vst [vmem:[%s399 + $0x30] sm:$0xff] %v711
      %844 = vst [vmem:[%s399 + $0x38] sm:$0xff] %v712
      %s845 = smul.u32 2, %s24
      %p846 = scmp.lt.s32.totalorder %s23, 1
      %s847 = scalar_select %p846, %s23, 1
      %p848 = scmp.lt.s32.totalorder %s845, 1
      %s849 = scalar_select %p848, %s845, 1
      %s850 = smul.addr %s847, 2
      %s851 = sadd.s32 %s849, %s850
      %s852 = smul.addr %s851, 4
      %s853 = scalar_lea.vmem %s5, %s852
      %s854 = smul.u32 2, %s24
      %p855 = scmp.lt.s32.totalorder %s23, 1
      %s856 = scalar_select %p855, %s23, 1
      %p857 = scmp.lt.s32.totalorder %s854, 1
      %s858 = scalar_select %p857, %s854, 1
      %s859 = smul.addr %s856, 8
      %s860 = sadd.s32 %s858, %s859
      %s861 = smul.addr %s860, 8
      %s862 = scalar_lea.vmem %s6, %s861
      %s863 = smul.u32 2, %s24
      %p864 = scmp.lt.s32.totalorder %s23, 1
      %s865 = scalar_select %p864, %s23, 1
      %p866 = scmp.lt.s32.totalorder %s863, 1
      %s867 = scalar_select %p866, %s863, 1
      %s868 = smul.addr %s865, 8
      %s869 = sadd.s32 %s867, %s868
      %s870 = smul.addr %s869, 8
      %s871 = scalar_lea.vmem %s7, %s870
      // Predicated region
      $region41: #{attention_gate.1} parent=39 // pred_check
        %p872 = pneg %p170
      $region42: #{attention_gate.1} parent=39 // pred_check_branch
        %874 = sbr.rel (%p872) target = $region44
      $region43: #{attention_gate.1} parent=39 // pred_region
        %s875 = smul.u32 2, %s24
      $region44: #{attention_gate.1} parent=39 // pred_fallthru
        _
      // Predicated region
      $region45: #{attention_gate.1} parent=39 // pred_check
        %p876 = pneg %p198
      $region46: #{attention_gate.1} parent=39 // pred_check_branch
        %878 = sbr.rel (%p876) target = $region48
      $region47: #{attention_gate.1} parent=39 // pred_region
        %s879 = smul.u32 2, %s24
      $region48: #{attention_gate.1} parent=39 // pred_fallthru
        _
      // Predicated region
      $region49: #{attention_gate.1} parent=39 // pred_check
        %p880 = pneg %p226
      $region50: #{attention_gate.1} parent=39 // pred_check_branch
        %882 = sbr.rel (%p880) target = $region52
      $region51: #{attention_gate.1} parent=39 // pred_region
        %s883 = smul.u32 2, %s24
      $region52: #{attention_gate.1} parent=39 // pred_fallthru
        _
    $region40: #{attention_gate.1} parent=5 // pred_fallthru
      _
    %p884 = scmp.le.s32.totalorder 2, %s14
    // Predicated region
    $region53: #{attention_gate.1} parent=5 // pred_check
      %p885 = pneg %p884
    $region54: #{attention_gate.1} parent=5 // pred_check_branch
      %887 = sbr.rel (%p885) target = $region56
    $region55: #{attention_gate.1} parent=5 // pred_region
      %s888 = ssub.s32 %s14, 2
      // Predicated region
      $region57: #{attention_gate.1} parent=55 // pred_check
        %p889 = pneg %p176
      $region58: #{attention_gate.1} parent=55 // pred_check_branch
        %891 = sbr.rel (%p889) target = $region60
      $region59: #{attention_gate.1} parent=55 // pred_region
        %s892 = smul.u32 2, %s26
        %p893 = scmp.lt.s32.totalorder %s25, 1
        %s894 = scalar_select %p893, %s25, 1
        %p895 = scmp.lt.s32.totalorder %s892, 1
        %s896 = scalar_select %p895, %s892, 1
        %s897 = smul.addr %s894, 2
        %s898 = sadd.s32 %s896, %s897
        %s899 = smul.addr %s898, 4
        %s900 = scalar_lea.vmem %s5, %s899
      $region60: #{attention_gate.1} parent=55 // pred_fallthru
        _
      // Predicated region
      $region61: #{attention_gate.1} parent=55 // pred_check
        %p901 = pneg %p204
      $region62: #{attention_gate.1} parent=55 // pred_check_branch
        %903 = sbr.rel (%p901) target = $region64
      $region63: #{attention_gate.1} parent=55 // pred_region
        %s904 = smul.u32 2, %s26
        %p905 = scmp.lt.s32.totalorder %s25, 1
        %s906 = scalar_select %p905, %s25, 1
        %p907 = scmp.lt.s32.totalorder %s904, 1
        %s908 = scalar_select %p907, %s904, 1
        %s909 = smul.addr %s906, 8
        %s910 = sadd.s32 %s908, %s909
        %s911 = smul.addr %s910, 8
        %s912 = scalar_lea.vmem %s6, %s911
      $region64: #{attention_gate.1} parent=55 // pred_fallthru
        _
      // Predicated region
      $region65: #{attention_gate.1} parent=55 // pred_check
        %p913 = pneg %p232
      $region66: #{attention_gate.1} parent=55 // pred_check_branch
        %915 = sbr.rel (%p913) target = $region68
      $region67: #{attention_gate.1} parent=55 // pred_region
        %s916 = smul.u32 2, %s26
        %p917 = scmp.lt.s32.totalorder %s25, 1
        %s918 = scalar_select %p917, %s25, 1
        %p919 = scmp.lt.s32.totalorder %s916, 1
        %s920 = scalar_select %p919, %s916, 1
        %s921 = smul.addr %s918, 8
        %s922 = sadd.s32 %s920, %s921
        %s923 = smul.addr %s922, 8
        %s924 = scalar_lea.vmem %s7, %s923
      $region68: #{attention_gate.1} parent=55 // pred_fallthru
        _
    $region56: #{attention_gate.1} parent=5 // pred_fallthru
      _
  $region6: #{attention_gate.1} parent=0 // loop_footer
    %s18 = sadd.s32 1, %s14
  $region7: #{attention_gate.1} parent=0 // loop_footer_branch
    %13 = sbr.rel target = $region3
  $region8: #{attention_gate.1} parent=0 // loop_exit
    _

</llo_original>
